<compile_context>
chip_gen: v7x
topology: tpu7x:2x2x1
jax: 0.10.0
libtpu: 0.0.40
codegen_flags: <defaults>
</compile_context>

<pallas_src>
import functools

import jax
import jax.numpy as jnp
from jax.experimental import pallas as pl
from jax.experimental.pallas import tpu as pltpu


def _bidir_loss_kernel(feat_ref, l1c_ref, l1r_ref, l2c_ref, l2r_ref,
                       out_ref, *, batch_size, lamda, margin):
    B = batch_size
    f1 = feat_ref[pl.ds(0, B), :].astype(jnp.float32)   # visible  (B, D)
    f2 = feat_ref[pl.ds(B, B), :].astype(jnp.float32)   # thermal  (B, D)

    col = jax.lax.broadcasted_iota(jnp.int32, (B, B), 1)   # column indices
    row = jax.lax.broadcasted_iota(jnp.int32, (B, B), 0)   # row indices
    eye = (row == col).astype(jnp.float32)                 # (B, B) identity

    # Gram matrices on the MXU (f32 accumulation).
    g11 = jnp.dot(f1, f1.T, preferred_element_type=jnp.float32)   # (B, B)
    g22 = jnp.dot(f2, f2.T, preferred_element_type=jnp.float32)   # (B, B)
    g12 = jnp.dot(f1, f2.T, preferred_element_type=jnp.float32)   # (B, B)
    # Reverse-direction Gram as a second MXU matmul (cheap; avoids an explicit
    # (B, B) transpose which is layout-fragile at small, unaligned sizes).
    g21 = jnp.dot(f2, f1.T, preferred_element_type=jnp.float32)   # (B, B)

    # Squared norms from the Gram diagonals -> both (B,1) and (1,B) forms
    # without any transpose (sublane reduction gives the row form directly).
    n1_col = jnp.sum(g11 * eye, axis=1, keepdims=True)   # (B, 1)
    n1_row = jnp.sum(g11 * eye, axis=0, keepdims=True)   # (1, B)
    n2_col = jnp.sum(g22 * eye, axis=1, keepdims=True)   # (B, 1)
    n2_row = jnp.sum(g22 * eye, axis=0, keepdims=True)   # (1, B)

    def dist(gram, n_col, n_row):
        d2 = jnp.maximum(n_col + n_row - 2.0 * gram, 0.0)   # clamp cancellation
        return jnp.sqrt(d2 + 1e-12)                          # matches torch cdist

    dis_12 = dist(g12, n1_col, n2_row)        # visible -> thermal (B, B)
    dis_21 = dist(g21, n2_col, n1_row)        # thermal -> visible (B, B)
    dis_thermal = dist(g22, n2_col, n2_row)   # (B, B)
    dis_visible = dist(g11, n1_col, n1_row)   # (B, B)

    # Same-identity masks for both directions.
    s1 = (l1c_ref[...] == l2r_ref[...]).astype(jnp.float32)   # label1[i]==label2[j]
    s2 = (l2c_ref[...] == l1r_ref[...]).astype(jnp.float32)   # label2[i]==label1[j]

    def direction(dis, s_f, dis_intra):
        # furthest positive + argmax (first occurrence, like torch)
        masked_pos = dis * s_f
        fp = jnp.max(masked_pos, axis=1, keepdims=True)                     # (B,1)
        pos_positive = jnp.min(jnp.where(masked_pos == fp, col, B),
                               axis=1, keepdims=True)                       # (B,1)
        # closest negative + argmin (first occurrence)
        masked_neg = dis + 100000.0 * s_f
        cn = jnp.min(masked_neg, axis=1, keepdims=True)                     # (B,1)
        pos_negative = jnp.min(jnp.where(masked_neg == cn, col, B),
                               axis=1, keepdims=True)                       # (B,1)

        cross = jnp.maximum(fp - cn + margin, 0.0)                          # (B,1)
        loss_cross = jnp.sum(cross, axis=0, keepdims=True) / B              # (1,1)

        # gather_2d: dis_intra[pos_positive[k], pos_negative[k]] via one-hot
        # row-select matmul (MXU) + masked lane reduction.
        row_oh = (col == pos_positive).astype(jnp.float32)                  # (B,B)
        sel_rows = jnp.dot(row_oh, dis_intra,
                           preferred_element_type=jnp.float32)              # (B,B)
        col_oh = (col == pos_negative).astype(jnp.float32)                  # (B,B)
        vals = jnp.sum(sel_rows * col_oh, axis=1, keepdims=True)            # (B,1)
        intra = jnp.maximum(0.1 - vals, 0.0)
        intra_loss = jnp.sum(intra, axis=0, keepdims=True) / B              # (1,1)
        return loss_cross, intra_loss

    lc1, il1 = direction(dis_12, s1, dis_thermal)
    lc2, il2 = direction(dis_21, s2, dis_visible)

    out_ref[...] = (lc1 + lc2) + lamda * (il1 + il2)          # (1,1)


def bidirectional_loss(feat, label1, label2, *, lamda, batch_size, margin=0.5):
    B = batch_size
    feat = feat.astype(jnp.float32)
    l1 = label1.astype(jnp.int32)
    l2 = label2.astype(jnp.int32)
    l1c = l1.reshape(B, 1)
    l1r = l1.reshape(1, B)
    l2c = l2.reshape(B, 1)
    l2r = l2.reshape(1, B)

    kernel = functools.partial(_bidir_loss_kernel, batch_size=B,
                               lamda=float(lamda), margin=float(margin))
    vmem = pl.BlockSpec(memory_space=pltpu.MemorySpace.VMEM)
    out = pl.pallas_call(
        kernel,
        out_shape=jax.ShapeDtypeStruct((1, 1), jnp.float32),
        in_specs=[vmem] * 5,
        out_specs=vmem,
    )(feat, l1c, l1r, l2c, l2r)
    return out[0, 0]


def _reference(feat, label1, label2, lamda, batch_size, margin=0.5):
    """Pure-JAX mirror of the PyTorch forward pass (for verification)."""
    f1 = feat[:batch_size]
    f2 = feat[batch_size:2 * batch_size]

    def cdist(a, b):
        d = a[:, None, :] - b[None, :, :]
        return jnp.sqrt(jnp.sum(d * d, -1) + 1e-12)

    def one_dir(fa, fb, la, lb, intra_feats):
        s = (la[:, None] == lb[None, :]).astype(jnp.float32)
        dis = cdist(fa, fb)
        fp = jnp.max(dis * s, axis=1)
        pp = jnp.argmax(dis * s, axis=1)
        cn = jnp.min(dis + 100000.0 * s, axis=1)
        pn = jnp.argmin(dis + 100000.0 * s, axis=1)
        cross = jnp.maximum(fp - cn + margin, 0.0)
        dis_intra = cdist(intra_feats, intra_feats)
        intra = jnp.maximum(0.1 - dis_intra[pp, pn], 0.0)
        return jnp.mean(cross), jnp.mean(intra)

    lc1, il1 = one_dir(f1, f2, label1, label2, f2)
    lc2, il2 = one_dir(f2, f1, label2, label1, f1)
    return (lc1 + lc2) + lamda * (il1 + il2)


if __name__ == "__main__":
    key = jax.random.PRNGKey(0)
    # B multiple of 8 (sublane), D multiple of 128 (lane) -> no masked vld/vst.
    B, D = 8, 128
    k1, k2, k3 = jax.random.split(key, 3)
    feat = jax.random.normal(k1, (2 * B, D), dtype=jnp.float32)
    label1 = jax.random.randint(k2, (B,), 0, 4, dtype=jnp.int32)
    label2 = jax.random.randint(k3, (B,), 0, 4, dtype=jnp.int32)

    loss = bidirectional_loss(feat, label1, label2,
                              lamda=0.5, batch_size=B, margin=0.5)
    loss = jax.block_until_ready(loss)

    ref = _reference(feat, label1, label2, 0.5, B, 0.5)
    # Gram-form cdist drifts slightly from the broadcast-difference reference.
    assert jnp.allclose(loss, ref, atol=1e-4, rtol=1e-4), (float(loss), float(ref))
    print("KERNEL_OK")
</pallas_src>

<mosaic_0001>
module attributes {stable_mosaic.version = 11 : i64} {
  func.func @_bidir_loss_kernel(%arg0: memref<16x128xf32, #tpu.memory_space<vmem>>, %arg1: memref<8x1xi32, #tpu.memory_space<vmem>>, %arg2: memref<1x8xi32, #tpu.memory_space<vmem>>, %arg3: memref<8x1xi32, #tpu.memory_space<vmem>>, %arg4: memref<1x8xi32, #tpu.memory_space<vmem>>, %arg5: memref<1x1xf32, #tpu.memory_space<vmem>>) attributes {dimension_semantics = [], scalar_prefetch = 0 : i64, scratch_operands = 0 : i64, tpu.core_type = #tpu.core_type<tc>} {
    %c0 = arith.constant 0 : index
    %c0_0 = arith.constant 0 : index
    %0 = vector.load %arg0[%c0, %c0_0] : memref<16x128xf32, #tpu.memory_space<vmem>>, vector<8x128xf32>
    %c8 = arith.constant 8 : index
    %c0_1 = arith.constant 0 : index
    %1 = vector.load %arg0[%c8, %c0_1] : memref<16x128xf32, #tpu.memory_space<vmem>>, vector<8x128xf32>
    %2 = tpu.iota {dimensions = array<i32: 1>} : vector<8x8xi32>
    %3 = tpu.iota {dimensions = array<i32: 0>} : vector<8x8xi32>
    %4 = arith.cmpi eq, %3, %2 : vector<8x8xi32>
    %5 = arith.extui %4 : vector<8x8xi1> to vector<8x8xi32>
    %6 = arith.sitofp %5 : vector<8x8xi32> to vector<8x8xf32>
    %7 = tpu.transpose %0, [1, 0] : vector<8x128xf32> -> vector<128x8xf32>
    %cst = arith.constant dense<0.000000e+00> : vector<8x8xf32>
    %8 = tpu.matmul %0, %7, %cst {dimension_numbers = #tpu.dot_dimension_numbers<[1], [0], [0], [1], [0, 0, 1, 1], [], []>} : vector<8x128xf32>, vector<128x8xf32>, vector<8x8xf32> -> vector<8x8xf32>
    %9 = tpu.transpose %1, [1, 0] : vector<8x128xf32> -> vector<128x8xf32>
    %cst_2 = arith.constant dense<0.000000e+00> : vector<8x8xf32>
    %10 = tpu.matmul %1, %9, %cst_2 {dimension_numbers = #tpu.dot_dimension_numbers<[1], [0], [0], [1], [0, 0, 1, 1], [], []>} : vector<8x128xf32>, vector<128x8xf32>, vector<8x8xf32> -> vector<8x8xf32>
    %11 = tpu.transpose %1, [1, 0] : vector<8x128xf32> -> vector<128x8xf32>
    %cst_3 = arith.constant dense<0.000000e+00> : vector<8x8xf32>
    %12 = tpu.matmul %0, %11, %cst_3 {dimension_numbers = #tpu.dot_dimension_numbers<[1], [0], [0], [1], [0, 0, 1, 1], [], []>} : vector<8x128xf32>, vector<128x8xf32>, vector<8x8xf32> -> vector<8x8xf32>
    %13 = tpu.transpose %0, [1, 0] : vector<8x128xf32> -> vector<128x8xf32>
    %cst_4 = arith.constant dense<0.000000e+00> : vector<8x8xf32>
    %14 = tpu.matmul %1, %13, %cst_4 {dimension_numbers = #tpu.dot_dimension_numbers<[1], [0], [0], [1], [0, 0, 1, 1], [], []>} : vector<8x128xf32>, vector<128x8xf32>, vector<8x8xf32> -> vector<8x8xf32>
    %15 = arith.mulf %8, %6 : vector<8x8xf32>
    %cst_5 = arith.constant dense<0.000000e+00> : vector<8xf32>
    %16 = vector.multi_reduction <add>, %15, %cst_5 [1] : vector<8x8xf32> to vector<8xf32>
    %17 = vector.shape_cast %16 : vector<8xf32> to vector<8x1xf32>
    %18 = arith.mulf %8, %6 : vector<8x8xf32>
    %cst_6 = arith.constant dense<0.000000e+00> : vector<8xf32>
    %19 = vector.multi_reduction <add>, %18, %cst_6 [0] : vector<8x8xf32> to vector<8xf32>
    %20 = vector.shape_cast %19 : vector<8xf32> to vector<1x8xf32>
    %21 = arith.mulf %10, %6 : vector<8x8xf32>
    %cst_7 = arith.constant dense<0.000000e+00> : vector<8xf32>
    %22 = vector.multi_reduction <add>, %21, %cst_7 [1] : vector<8x8xf32> to vector<8xf32>
    %23 = vector.shape_cast %22 : vector<8xf32> to vector<8x1xf32>
    %24 = arith.mulf %10, %6 : vector<8x8xf32>
    %cst_8 = arith.constant dense<0.000000e+00> : vector<8xf32>
    %25 = vector.multi_reduction <add>, %24, %cst_8 [0] : vector<8x8xf32> to vector<8xf32>
    %26 = vector.shape_cast %25 : vector<8xf32> to vector<1x8xf32>
    %27 = vector.broadcast %17 : vector<8x1xf32> to vector<8x8xf32>
    %28 = vector.broadcast %26 : vector<1x8xf32> to vector<8x8xf32>
    %29 = arith.addf %27, %28 : vector<8x8xf32>
    %cst_9 = arith.constant 2.000000e+00 : f32
    %30 = vector.broadcast %cst_9 : f32 to vector<8x8xf32>
    %31 = arith.mulf %30, %12 : vector<8x8xf32>
    %32 = arith.subf %29, %31 : vector<8x8xf32>
    %cst_10 = arith.constant 0.000000e+00 : f32
    %33 = vector.broadcast %cst_10 : f32 to vector<8x8xf32>
    %34 = arith.maximumf %32, %33 : vector<8x8xf32>
    %cst_11 = arith.constant 9.99999996E-13 : f32
    %35 = vector.broadcast %cst_11 : f32 to vector<8x8xf32>
    %36 = arith.addf %34, %35 : vector<8x8xf32>
    %37 = math.sqrt %36 : vector<8x8xf32>
    %38 = vector.broadcast %23 : vector<8x1xf32> to vector<8x8xf32>
    %39 = vector.broadcast %20 : vector<1x8xf32> to vector<8x8xf32>
    %40 = arith.addf %38, %39 : vector<8x8xf32>
    %cst_12 = arith.constant 2.000000e+00 : f32
    %41 = vector.broadcast %cst_12 : f32 to vector<8x8xf32>
    %42 = arith.mulf %41, %14 : vector<8x8xf32>
    %43 = arith.subf %40, %42 : vector<8x8xf32>
    %cst_13 = arith.constant 0.000000e+00 : f32
    %44 = vector.broadcast %cst_13 : f32 to vector<8x8xf32>
    %45 = arith.maximumf %43, %44 : vector<8x8xf32>
    %cst_14 = arith.constant 9.99999996E-13 : f32
    %46 = vector.broadcast %cst_14 : f32 to vector<8x8xf32>
    %47 = arith.addf %45, %46 : vector<8x8xf32>
    %48 = math.sqrt %47 : vector<8x8xf32>
    %49 = vector.broadcast %23 : vector<8x1xf32> to vector<8x8xf32>
    %50 = vector.broadcast %26 : vector<1x8xf32> to vector<8x8xf32>
    %51 = arith.addf %49, %50 : vector<8x8xf32>
    %cst_15 = arith.constant 2.000000e+00 : f32
    %52 = vector.broadcast %cst_15 : f32 to vector<8x8xf32>
    %53 = arith.mulf %52, %10 : vector<8x8xf32>
    %54 = arith.subf %51, %53 : vector<8x8xf32>
    %cst_16 = arith.constant 0.000000e+00 : f32
    %55 = vector.broadcast %cst_16 : f32 to vector<8x8xf32>
    %56 = arith.maximumf %54, %55 : vector<8x8xf32>
    %cst_17 = arith.constant 9.99999996E-13 : f32
    %57 = vector.broadcast %cst_17 : f32 to vector<8x8xf32>
    %58 = arith.addf %56, %57 : vector<8x8xf32>
    %59 = math.sqrt %58 : vector<8x8xf32>
    %60 = vector.broadcast %17 : vector<8x1xf32> to vector<8x8xf32>
    %61 = vector.broadcast %20 : vector<1x8xf32> to vector<8x8xf32>
    %62 = arith.addf %60, %61 : vector<8x8xf32>
    %cst_18 = arith.constant 2.000000e+00 : f32
    %63 = vector.broadcast %cst_18 : f32 to vector<8x8xf32>
    %64 = arith.mulf %63, %8 : vector<8x8xf32>
    %65 = arith.subf %62, %64 : vector<8x8xf32>
    %cst_19 = arith.constant 0.000000e+00 : f32
    %66 = vector.broadcast %cst_19 : f32 to vector<8x8xf32>
    %67 = arith.maximumf %65, %66 : vector<8x8xf32>
    %cst_20 = arith.constant 9.99999996E-13 : f32
    %68 = vector.broadcast %cst_20 : f32 to vector<8x8xf32>
    %69 = arith.addf %67, %68 : vector<8x8xf32>
    %70 = math.sqrt %69 : vector<8x8xf32>
    %c0_21 = arith.constant 0 : index
    %c0_22 = arith.constant 0 : index
    %71 = vector.load %arg1[%c0_21, %c0_22] : memref<8x1xi32, #tpu.memory_space<vmem>>, vector<8x1xi32>
    %c0_23 = arith.constant 0 : index
    %c0_24 = arith.constant 0 : index
    %72 = vector.load %arg4[%c0_23, %c0_24] : memref<1x8xi32, #tpu.memory_space<vmem>>, vector<1x8xi32>
    %73 = vector.broadcast %71 : vector<8x1xi32> to vector<8x8xi32>
    %74 = vector.broadcast %72 : vector<1x8xi32> to vector<8x8xi32>
    %75 = arith.cmpi eq, %73, %74 : vector<8x8xi32>
    %76 = arith.extui %75 : vector<8x8xi1> to vector<8x8xi32>
    %77 = arith.sitofp %76 : vector<8x8xi32> to vector<8x8xf32>
    %c0_25 = arith.constant 0 : index
    %c0_26 = arith.constant 0 : index
    %78 = vector.load %arg3[%c0_25, %c0_26] : memref<8x1xi32, #tpu.memory_space<vmem>>, vector<8x1xi32>
    %c0_27 = arith.constant 0 : index
    %c0_28 = arith.constant 0 : index
    %79 = vector.load %arg2[%c0_27, %c0_28] : memref<1x8xi32, #tpu.memory_space<vmem>>, vector<1x8xi32>
    %80 = vector.broadcast %78 : vector<8x1xi32> to vector<8x8xi32>
    %81 = vector.broadcast %79 : vector<1x8xi32> to vector<8x8xi32>
    %82 = arith.cmpi eq, %80, %81 : vector<8x8xi32>
    %83 = arith.extui %82 : vector<8x8xi1> to vector<8x8xi32>
    %84 = arith.sitofp %83 : vector<8x8xi32> to vector<8x8xf32>
    %85 = arith.mulf %37, %77 : vector<8x8xf32>
    %cst_29 = arith.constant dense<0xFF800000> : vector<8xf32>
    %86 = vector.multi_reduction <maximumf>, %85, %cst_29 [1] : vector<8x8xf32> to vector<8xf32>
    %87 = vector.shape_cast %86 : vector<8xf32> to vector<8x1xf32>
    %88 = vector.broadcast %87 : vector<8x1xf32> to vector<8x8xf32>
    %89 = arith.cmpf oeq, %85, %88 : vector<8x8xf32>
    %c8_i32 = arith.constant 8 : i32
    %90 = vector.broadcast %c8_i32 : i32 to vector<8x8xi32>
    %91 = arith.select %89, %2, %90 : vector<8x8xi1>, vector<8x8xi32>
    %cst_30 = arith.constant dense<2147483647> : vector<8xi32>
    %92 = vector.multi_reduction <minsi>, %91, %cst_30 [1] : vector<8x8xi32> to vector<8xi32>
    %93 = vector.shape_cast %92 : vector<8xi32> to vector<8x1xi32>
    %cst_31 = arith.constant 1.000000e+05 : f32
    %94 = vector.broadcast %cst_31 : f32 to vector<8x8xf32>
    %95 = arith.mulf %94, %77 : vector<8x8xf32>
    %96 = arith.addf %37, %95 : vector<8x8xf32>
    %cst_32 = arith.constant dense<0x7F800000> : vector<8xf32>
    %97 = vector.multi_reduction <minimumf>, %96, %cst_32 [1] : vector<8x8xf32> to vector<8xf32>
    %98 = vector.shape_cast %97 : vector<8xf32> to vector<8x1xf32>
    %99 = vector.broadcast %98 : vector<8x1xf32> to vector<8x8xf32>
    %100 = arith.cmpf oeq, %96, %99 : vector<8x8xf32>
    %c8_i32_33 = arith.constant 8 : i32
    %101 = vector.broadcast %c8_i32_33 : i32 to vector<8x8xi32>
    %102 = arith.select %100, %2, %101 : vector<8x8xi1>, vector<8x8xi32>
    %cst_34 = arith.constant dense<2147483647> : vector<8xi32>
    %103 = vector.multi_reduction <minsi>, %102, %cst_34 [1] : vector<8x8xi32> to vector<8xi32>
    %104 = vector.shape_cast %103 : vector<8xi32> to vector<8x1xi32>
    %105 = arith.subf %87, %98 : vector<8x1xf32>
    %cst_35 = arith.constant 5.000000e-01 : f32
    %106 = vector.broadcast %cst_35 : f32 to vector<8x1xf32>
    %107 = arith.addf %105, %106 : vector<8x1xf32>
    %cst_36 = arith.constant 0.000000e+00 : f32
    %108 = vector.broadcast %cst_36 : f32 to vector<8x1xf32>
    %109 = arith.maximumf %107, %108 : vector<8x1xf32>
    %cst_37 = arith.constant dense<0.000000e+00> : vector<1xf32>
    %110 = vector.multi_reduction <add>, %109, %cst_37 [0] : vector<8x1xf32> to vector<1xf32>
    %111 = vector.shape_cast %110 : vector<1xf32> to vector<1x1xf32>
    %cst_38 = arith.constant 8.000000e+00 : f32
    %112 = vector.broadcast %cst_38 : f32 to vector<1x1xf32>
    %113 = arith.divf %111, %112 : vector<1x1xf32>
    %114 = vector.broadcast %93 : vector<8x1xi32> to vector<8x8xi32>
    %115 = arith.cmpi eq, %2, %114 : vector<8x8xi32>
    %116 = arith.extui %115 : vector<8x8xi1> to vector<8x8xi32>
    %117 = arith.sitofp %116 : vector<8x8xi32> to vector<8x8xf32>
    %cst_39 = arith.constant dense<0.000000e+00> : vector<8x8xf32>
    %118 = tpu.matmul %117, %59, %cst_39 {dimension_numbers = #tpu.dot_dimension_numbers<[1], [0], [0], [1], [0, 0, 1, 1], [], []>} : vector<8x8xf32>, vector<8x8xf32>, vector<8x8xf32> -> vector<8x8xf32>
    %119 = vector.broadcast %104 : vector<8x1xi32> to vector<8x8xi32>
    %120 = arith.cmpi eq, %2, %119 : vector<8x8xi32>
    %121 = arith.extui %120 : vector<8x8xi1> to vector<8x8xi32>
    %122 = arith.sitofp %121 : vector<8x8xi32> to vector<8x8xf32>
    %123 = arith.mulf %118, %122 : vector<8x8xf32>
    %cst_40 = arith.constant dense<0.000000e+00> : vector<8xf32>
    %124 = vector.multi_reduction <add>, %123, %cst_40 [1] : vector<8x8xf32> to vector<8xf32>
    %125 = vector.shape_cast %124 : vector<8xf32> to vector<8x1xf32>
    %cst_41 = arith.constant 1.000000e-01 : f32
    %126 = vector.broadcast %cst_41 : f32 to vector<8x1xf32>
    %127 = arith.subf %126, %125 : vector<8x1xf32>
    %cst_42 = arith.constant 0.000000e+00 : f32
    %128 = vector.broadcast %cst_42 : f32 to vector<8x1xf32>
    %129 = arith.maximumf %127, %128 : vector<8x1xf32>
    %cst_43 = arith.constant dense<0.000000e+00> : vector<1xf32>
    %130 = vector.multi_reduction <add>, %129, %cst_43 [0] : vector<8x1xf32> to vector<1xf32>
    %131 = vector.shape_cast %130 : vector<1xf32> to vector<1x1xf32>
    %cst_44 = arith.constant 8.000000e+00 : f32
    %132 = vector.broadcast %cst_44 : f32 to vector<1x1xf32>
    %133 = arith.divf %131, %132 : vector<1x1xf32>
    %134 = arith.mulf %48, %84 : vector<8x8xf32>
    %cst_45 = arith.constant dense<0xFF800000> : vector<8xf32>
    %135 = vector.multi_reduction <maximumf>, %134, %cst_45 [1] : vector<8x8xf32> to vector<8xf32>
    %136 = vector.shape_cast %135 : vector<8xf32> to vector<8x1xf32>
    %137 = vector.broadcast %136 : vector<8x1xf32> to vector<8x8xf32>
    %138 = arith.cmpf oeq, %134, %137 : vector<8x8xf32>
    %c8_i32_46 = arith.constant 8 : i32
    %139 = vector.broadcast %c8_i32_46 : i32 to vector<8x8xi32>
    %140 = arith.select %138, %2, %139 : vector<8x8xi1>, vector<8x8xi32>
    %cst_47 = arith.constant dense<2147483647> : vector<8xi32>
    %141 = vector.multi_reduction <minsi>, %140, %cst_47 [1] : vector<8x8xi32> to vector<8xi32>
    %142 = vector.shape_cast %141 : vector<8xi32> to vector<8x1xi32>
    %cst_48 = arith.constant 1.000000e+05 : f32
    %143 = vector.broadcast %cst_48 : f32 to vector<8x8xf32>
    %144 = arith.mulf %143, %84 : vector<8x8xf32>
    %145 = arith.addf %48, %144 : vector<8x8xf32>
    %cst_49 = arith.constant dense<0x7F800000> : vector<8xf32>
    %146 = vector.multi_reduction <minimumf>, %145, %cst_49 [1] : vector<8x8xf32> to vector<8xf32>
    %147 = vector.shape_cast %146 : vector<8xf32> to vector<8x1xf32>
    %148 = vector.broadcast %147 : vector<8x1xf32> to vector<8x8xf32>
    %149 = arith.cmpf oeq, %145, %148 : vector<8x8xf32>
    %c8_i32_50 = arith.constant 8 : i32
    %150 = vector.broadcast %c8_i32_50 : i32 to vector<8x8xi32>
    %151 = arith.select %149, %2, %150 : vector<8x8xi1>, vector<8x8xi32>
    %cst_51 = arith.constant dense<2147483647> : vector<8xi32>
    %152 = vector.multi_reduction <minsi>, %151, %cst_51 [1] : vector<8x8xi32> to vector<8xi32>
    %153 = vector.shape_cast %152 : vector<8xi32> to vector<8x1xi32>
    %154 = arith.subf %136, %147 : vector<8x1xf32>
    %cst_52 = arith.constant 5.000000e-01 : f32
    %155 = vector.broadcast %cst_52 : f32 to vector<8x1xf32>
    %156 = arith.addf %154, %155 : vector<8x1xf32>
    %cst_53 = arith.constant 0.000000e+00 : f32
    %157 = vector.broadcast %cst_53 : f32 to vector<8x1xf32>
    %158 = arith.maximumf %156, %157 : vector<8x1xf32>
    %cst_54 = arith.constant dense<0.000000e+00> : vector<1xf32>
    %159 = vector.multi_reduction <add>, %158, %cst_54 [0] : vector<8x1xf32> to vector<1xf32>
    %160 = vector.shape_cast %159 : vector<1xf32> to vector<1x1xf32>
    %cst_55 = arith.constant 8.000000e+00 : f32
    %161 = vector.broadcast %cst_55 : f32 to vector<1x1xf32>
    %162 = arith.divf %160, %161 : vector<1x1xf32>
    %163 = vector.broadcast %142 : vector<8x1xi32> to vector<8x8xi32>
    %164 = arith.cmpi eq, %2, %163 : vector<8x8xi32>
    %165 = arith.extui %164 : vector<8x8xi1> to vector<8x8xi32>
    %166 = arith.sitofp %165 : vector<8x8xi32> to vector<8x8xf32>
    %cst_56 = arith.constant dense<0.000000e+00> : vector<8x8xf32>
    %167 = tpu.matmul %166, %70, %cst_56 {dimension_numbers = #tpu.dot_dimension_numbers<[1], [0], [0], [1], [0, 0, 1, 1], [], []>} : vector<8x8xf32>, vector<8x8xf32>, vector<8x8xf32> -> vector<8x8xf32>
    %168 = vector.broadcast %153 : vector<8x1xi32> to vector<8x8xi32>
    %169 = arith.cmpi eq, %2, %168 : vector<8x8xi32>
    %170 = arith.extui %169 : vector<8x8xi1> to vector<8x8xi32>
    %171 = arith.sitofp %170 : vector<8x8xi32> to vector<8x8xf32>
    %172 = arith.mulf %167, %171 : vector<8x8xf32>
    %cst_57 = arith.constant dense<0.000000e+00> : vector<8xf32>
    %173 = vector.multi_reduction <add>, %172, %cst_57 [1] : vector<8x8xf32> to vector<8xf32>
    %174 = vector.shape_cast %173 : vector<8xf32> to vector<8x1xf32>
    %cst_58 = arith.constant 1.000000e-01 : f32
    %175 = vector.broadcast %cst_58 : f32 to vector<8x1xf32>
    %176 = arith.subf %175, %174 : vector<8x1xf32>
    %cst_59 = arith.constant 0.000000e+00 : f32
    %177 = vector.broadcast %cst_59 : f32 to vector<8x1xf32>
    %178 = arith.maximumf %176, %177 : vector<8x1xf32>
    %cst_60 = arith.constant dense<0.000000e+00> : vector<1xf32>
    %179 = vector.multi_reduction <add>, %178, %cst_60 [0] : vector<8x1xf32> to vector<1xf32>
    %180 = vector.shape_cast %179 : vector<1xf32> to vector<1x1xf32>
    %cst_61 = arith.constant 8.000000e+00 : f32
    %181 = vector.broadcast %cst_61 : f32 to vector<1x1xf32>
    %182 = arith.divf %180, %181 : vector<1x1xf32>
    %183 = arith.addf %113, %162 : vector<1x1xf32>
    %184 = arith.addf %133, %182 : vector<1x1xf32>
    %cst_62 = arith.constant 5.000000e-01 : f32
    %185 = vector.broadcast %cst_62 : f32 to vector<1x1xf32>
    %186 = arith.mulf %185, %184 : vector<1x1xf32>
    %187 = arith.addf %183, %186 : vector<1x1xf32>
    %c0_63 = arith.constant 0 : index
    %c0_64 = arith.constant 0 : index
    %188 = vector.load %arg5[%c0_63, %c0_64] : memref<1x1xf32, #tpu.memory_space<vmem>>, vector<1x1xf32>
    tpu.vector_store %arg5[%c0_63, %c0_64], %187 {strides = array<i32>} : memref<1x1xf32, #tpu.memory_space<vmem>>, vector<1x1xf32>,
    return
  }
}

</mosaic_0001>

<llo_original>
// kernel: tpu_custom_call.1
$region0: #{tpu_custom_call.1}
  #allocation0 [shape = 'u32[]', space=smem, size = 0x4, offset = 0x4, fixed_abs, tag = 'smem constant byte address 0x4 - core index']
  #allocation1 [shape = 'u32[144,128]{1,0:T(1,128)}', space=vmem, size = 0x12000, scoped, tag = 'internal scratch']
  %s0 = inlined_call_operand.vmem [shape: f32[16,128], index: 0, kind: input, shape index: {}]
  %s1 = inlined_call_operand.vmem [shape: s32[8,1], index: 1, kind: input, shape index: {}]
  %s2 = inlined_call_operand.vmem [shape: s32[1,8], index: 2, kind: input, shape index: {}]
  %s3 = inlined_call_operand.vmem [shape: s32[8,1], index: 3, kind: input, shape index: {}]
  %s4 = inlined_call_operand.vmem [shape: s32[1,8], index: 4, kind: input, shape index: {}]
  %s5 = inlined_call_operand.hbm [shape: f32[1,1], index: 5, kind: output, shape index: {}]
  %s6 = sld [smem:[#allocation0]]
  $region30: #{tpu_custom_call.1} parent=0
    _
  %s8 = ssub.s32 1, %s6
  %s9 = scalar_select 0, %s8, %s6
  $region1: #{tpu_custom_call.1} parent=0
    #allocation2 [shape = 'u8[512]{0}', space=vmem, size = 0x400, scoped, tag = 'output window, operand 0, single buffered']
    #allocation3 [shape = 's32[1]{0}', space=sflag, size = 0x4, scoped, tag = 'scoped memory for tpu_custom_call.1']
    %10 = vsyncpa [#allocation3], 0
    // Predicated region
    $region2: #{tpu_custom_call.1} parent=1 // pred_check
      _
    $region3: #{tpu_custom_call.1} parent=1 // pred_check_branch
      %12 = sbr.rel (0) target = $region5
    $region4: #{tpu_custom_call.1} parent=1 // pred_region
      _
    $region5: #{tpu_custom_call.1} parent=1 // pred_fallthru
      _
    // Predicated region
    $region6: #{tpu_custom_call.1} parent=1 // pred_check
      _
    $region7: #{tpu_custom_call.1} parent=1 // pred_check_branch
      %14 = sbr.rel (0) target = $region9
    $region8: #{tpu_custom_call.1} parent=1 // pred_region
      _
    $region9: #{tpu_custom_call.1} parent=1 // pred_fallthru
      _
    // Predicated region
    $region10: #{tpu_custom_call.1} parent=1 // pred_check
      _
    $region11: #{tpu_custom_call.1} parent=1 // pred_check_branch
      %16 = sbr.rel (0) target = $region13
    $region12: #{tpu_custom_call.1} parent=1 // pred_region
      _
    $region13: #{tpu_custom_call.1} parent=1 // pred_fallthru
      _
    // Predicated region
    $region14: #{tpu_custom_call.1} parent=1 // pred_check
      _
    $region15: #{tpu_custom_call.1} parent=1 // pred_check_branch
      %18 = sbr.rel (0) target = $region17
    $region16: #{tpu_custom_call.1} parent=1 // pred_region
      _
    $region17: #{tpu_custom_call.1} parent=1 // pred_fallthru
      _
    // Predicated region
    $region18: #{tpu_custom_call.1} parent=1 // pred_check
      _
    $region19: #{tpu_custom_call.1} parent=1 // pred_check_branch
      %20 = sbr.rel (0) target = $region21
    $region20: #{tpu_custom_call.1} parent=1 // pred_region
      _
    $region21: #{tpu_custom_call.1} parent=1 // pred_fallthru
      _
    %v21 = vld [vmem:[%s0] sm:$0xff]
    %v22 = vld [vmem:[%s0 + $0x8] sm:$0xff]
    %v23 = vlaneseq
    %v24 = vand.u32 %v23, 127
    %v25 = vlaneseq
    %v26 = vshrl.u32 %v25, 7
    %vm27 = vcmp.eq.s32.totalorder %v26, %v24
    %v28 = vsel %vm27, 1, 0
    %v29 = vcvt.s32.f32 %v28
    %30 = vmatprep.subr.mxu0 0.0
    %31 = vmatpush1.xpose.msra.mxu0 %v21
    %32 = vmatprep.subr.mxu0 0.0
    %33 = vmatpush1.xpose.msra.mxu0 0.0
    %34 = vmatprep.subr.mxu0 0.0
    %35 = vmatpush1.xpose.msra.mxu0 0.0
    %36 = vmatprep.subr.mxu0 0.0
    %37 = vmatpush1.xpose.msra.mxu0 0.0
    %38 = vmatprep.subr.mxu0 0.0
    %39 = vmatpush1.xpose.msra.mxu0 0.0
    %40 = vmatprep.subr.mxu0 0.0
    %41 = vmatpush1.xpose.msra.mxu0 0.0
    %42 = vmatprep.subr.mxu0 0.0
    %43 = vmatpush1.xpose.msra.mxu0 0.0
    %44 = vmatprep.subr.mxu0 0.0
    %45 = vmatpush1.xpose.msra.mxu0 0.0
    %46 = vmatprep.subr.mxu0 0.0
    %47 = vmatpush1.xpose.msra.mxu0 0.0
    %48 = vmatprep.subr.mxu0 0.0
    %49 = vmatpush1.xpose.msra.mxu0 0.0
    %50 = vmatprep.subr.mxu0 0.0
    %51 = vmatpush1.xpose.msra.mxu0 0.0
    %52 = vmatprep.subr.mxu0 0.0
    %53 = vmatpush1.xpose.msra.mxu0 0.0
    %54 = vmatprep.subr.mxu0 0.0
    %55 = vmatpush1.xpose.msra.mxu0 0.0
    %56 = vmatprep.subr.mxu0 0.0
    %57 = vmatpush1.xpose.msra.mxu0 0.0
    %58 = vmatprep.subr.mxu0 0.0
    %59 = vmatpush1.xpose.msra.mxu0 0.0
    %60 = vmatprep.subr.mxu0 0.0
    %61 = vmatpush1.xpose.msra.mxu0 0.0
    %62 = vmatprep.subr.mxu0 0.0
    %63 = vmatpush1.xpose.msra.mxu0 0.0
    %64 = vmatprep.subr.mxu0 0.0
    %65 = vmatpush1.xpose.msra.mxu0 0.0
    %66 = vmatprep.subr.mxu0 0.0
    %67 = vmatpush1.xpose.msra.mxu0 0.0
    %68 = vmatprep.subr.mxu0 0.0
    %69 = vmatpush1.xpose.msra.mxu0 0.0
    %70 = vmatprep.subr.mxu0 0.0
    %71 = vmatpush1.xpose.msra.mxu0 0.0
    %72 = vmatprep.subr.mxu0 0.0
    %73 = vmatpush1.xpose.msra.mxu0 0.0
    %74 = vmatprep.subr.mxu0 0.0
    %75 = vmatpush1.xpose.msra.mxu0 0.0
    %76 = vmatprep.subr.mxu0 0.0
    %77 = vmatpush1.xpose.msra.mxu0 0.0
    %78 = vmatprep.subr.mxu0 0.0
    %79 = vmatpush1.xpose.msra.mxu0 0.0
    %80 = vmatprep.subr.mxu0 0.0
    %81 = vmatpush1.xpose.msra.mxu0 0.0
    %82 = vmatprep.subr.mxu0 0.0
    %83 = vmatpush1.xpose.msra.mxu0 0.0
    %84 = vmatprep.subr.mxu0 0.0
    %85 = vmatpush1.xpose.msra.mxu0 0.0
    %86 = vmatprep.subr.mxu0 0.0
    %87 = vmatpush1.xpose.msra.mxu0 0.0
    %88 = vmatprep.subr.mxu0 0.0
    %89 = vmatpush1.xpose.msra.mxu0 0.0
    %90 = vmatprep.subr.mxu0 0.0
    %91 = vmatpush1.xpose.msra.mxu0 0.0
    %92 = vmatprep.subr.mxu0 0.0
    %93 = vmatpush1.xpose.msra.mxu0 0.0
    %94 = vmatprep.mubr.f32.mxu0 0.0
    %95 = vmatmul.mubr.f32.gmra.mrb[0].mxu0 %v21
    %v96 = vpop.f32.mrb[0].mxu0
    %v97 = vadd.f32 0.0, %v96
    %v98 = vpop.f32.mrb[0].mxu0
    %99 = vdwg.mxu0
    %100 = vmatprep.subr.mxu0 0.0
    %101 = vmatpush1.xpose.msra.mxu0 %v22
    %102 = vmatprep.subr.mxu0 0.0
    %103 = vmatpush1.xpose.msra.mxu0 0.0
    %104 = vmatprep.subr.mxu0 0.0
    %105 = vmatpush1.xpose.msra.mxu0 0.0
    %106 = vmatprep.subr.mxu0 0.0
    %107 = vmatpush1.xpose.msra.mxu0 0.0
    %108 = vmatprep.subr.mxu0 0.0
    %109 = vmatpush1.xpose.msra.mxu0 0.0
    %110 = vmatprep.subr.mxu0 0.0
    %111 = vmatpush1.xpose.msra.mxu0 0.0
    %112 = vmatprep.subr.mxu0 0.0
    %113 = vmatpush1.xpose.msra.mxu0 0.0
    %114 = vmatprep.subr.mxu0 0.0
    %115 = vmatpush1.xpose.msra.mxu0 0.0
    %116 = vmatprep.subr.mxu0 0.0
    %117 = vmatpush1.xpose.msra.mxu0 0.0
    %118 = vmatprep.subr.mxu0 0.0
    %119 = vmatpush1.xpose.msra.mxu0 0.0
    %120 = vmatprep.subr.mxu0 0.0
    %121 = vmatpush1.xpose.msra.mxu0 0.0
    %122 = vmatprep.subr.mxu0 0.0
    %123 = vmatpush1.xpose.msra.mxu0 0.0
    %124 = vmatprep.subr.mxu0 0.0
    %125 = vmatpush1.xpose.msra.mxu0 0.0
    %126 = vmatprep.subr.mxu0 0.0
    %127 = vmatpush1.xpose.msra.mxu0 0.0
    %128 = vmatprep.subr.mxu0 0.0
    %129 = vmatpush1.xpose.msra.mxu0 0.0
    %130 = vmatprep.subr.mxu0 0.0
    %131 = vmatpush1.xpose.msra.mxu0 0.0
    %132 = vmatprep.subr.mxu0 0.0
    %133 = vmatpush1.xpose.msra.mxu0 0.0
    %134 = vmatprep.subr.mxu0 0.0
    %135 = vmatpush1.xpose.msra.mxu0 0.0
    %136 = vmatprep.subr.mxu0 0.0
    %137 = vmatpush1.xpose.msra.mxu0 0.0
    %138 = vmatprep.subr.mxu0 0.0
    %139 = vmatpush1.xpose.msra.mxu0 0.0
    %140 = vmatprep.subr.mxu0 0.0
    %141 = vmatpush1.xpose.msra.mxu0 0.0
    %142 = vmatprep.subr.mxu0 0.0
    %143 = vmatpush1.xpose.msra.mxu0 0.0
    %144 = vmatprep.subr.mxu0 0.0
    %145 = vmatpush1.xpose.msra.mxu0 0.0
    %146 = vmatprep.subr.mxu0 0.0
    %147 = vmatpush1.xpose.msra.mxu0 0.0
    %148 = vmatprep.subr.mxu0 0.0
    %149 = vmatpush1.xpose.msra.mxu0 0.0
    %150 = vmatprep.subr.mxu0 0.0
    %151 = vmatpush1.xpose.msra.mxu0 0.0
    %152 = vmatprep.subr.mxu0 0.0
    %153 = vmatpush1.xpose.msra.mxu0 0.0
    %154 = vmatprep.subr.mxu0 0.0
    %155 = vmatpush1.xpose.msra.mxu0 0.0
    %156 = vmatprep.subr.mxu0 0.0
    %157 = vmatpush1.xpose.msra.mxu0 0.0
    %158 = vmatprep.subr.mxu0 0.0
    %159 = vmatpush1.xpose.msra.mxu0 0.0
    %160 = vmatprep.subr.mxu0 0.0
    %161 = vmatpush1.xpose.msra.mxu0 0.0
    %162 = vmatprep.subr.mxu0 0.0
    %163 = vmatpush1.xpose.msra.mxu0 0.0
    %164 = vmatprep.mubr.f32.mxu0 0.0
    %165 = vmatmul.mubr.f32.gmra.mrb[0].mxu0 %v22
    %v166 = vpop.f32.mrb[0].mxu0
    %v167 = vadd.f32 0.0, %v166
    %v168 = vpop.f32.mrb[0].mxu0
    %169 = vdwg.mxu0
    %170 = vmatprep.subr.mxu0 0.0
    %171 = vmatpush1.xpose.msra.mxu0 %v22
    %172 = vmatprep.subr.mxu0 0.0
    %173 = vmatpush1.xpose.msra.mxu0 0.0
    %174 = vmatprep.subr.mxu0 0.0
    %175 = vmatpush1.xpose.msra.mxu0 0.0
    %176 = vmatprep.subr.mxu0 0.0
    %177 = vmatpush1.xpose.msra.mxu0 0.0
    %178 = vmatprep.subr.mxu0 0.0
    %179 = vmatpush1.xpose.msra.mxu0 0.0
    %180 = vmatprep.subr.mxu0 0.0
    %181 = vmatpush1.xpose.msra.mxu0 0.0
    %182 = vmatprep.subr.mxu0 0.0
    %183 = vmatpush1.xpose.msra.mxu0 0.0
    %184 = vmatprep.subr.mxu0 0.0
    %185 = vmatpush1.xpose.msra.mxu0 0.0
    %186 = vmatprep.subr.mxu0 0.0
    %187 = vmatpush1.xpose.msra.mxu0 0.0
    %188 = vmatprep.subr.mxu0 0.0
    %189 = vmatpush1.xpose.msra.mxu0 0.0
    %190 = vmatprep.subr.mxu0 0.0
    %191 = vmatpush1.xpose.msra.mxu0 0.0
    %192 = vmatprep.subr.mxu0 0.0
    %193 = vmatpush1.xpose.msra.mxu0 0.0
    %194 = vmatprep.subr.mxu0 0.0
    %195 = vmatpush1.xpose.msra.mxu0 0.0
    %196 = vmatprep.subr.mxu0 0.0
    %197 = vmatpush1.xpose.msra.mxu0 0.0
    %198 = vmatprep.subr.mxu0 0.0
    %199 = vmatpush1.xpose.msra.mxu0 0.0
    %200 = vmatprep.subr.mxu0 0.0
    %201 = vmatpush1.xpose.msra.mxu0 0.0
    %202 = vmatprep.subr.mxu0 0.0
    %203 = vmatpush1.xpose.msra.mxu0 0.0
    %204 = vmatprep.subr.mxu0 0.0
    %205 = vmatpush1.xpose.msra.mxu0 0.0
    %206 = vmatprep.subr.mxu0 0.0
    %207 = vmatpush1.xpose.msra.mxu0 0.0
    %208 = vmatprep.subr.mxu0 0.0
    %209 = vmatpush1.xpose.msra.mxu0 0.0
    %210 = vmatprep.subr.mxu0 0.0
    %211 = vmatpush1.xpose.msra.mxu0 0.0
    %212 = vmatprep.subr.mxu0 0.0
    %213 = vmatpush1.xpose.msra.mxu0 0.0
    %214 = vmatprep.subr.mxu0 0.0
    %215 = vmatpush1.xpose.msra.mxu0 0.0
    %216 = vmatprep.subr.mxu0 0.0
    %217 = vmatpush1.xpose.msra.mxu0 0.0
    %218 = vmatprep.subr.mxu0 0.0
    %219 = vmatpush1.xpose.msra.mxu0 0.0
    %220 = vmatprep.subr.mxu0 0.0
    %221 = vmatpush1.xpose.msra.mxu0 0.0
    %222 = vmatprep.subr.mxu0 0.0
    %223 = vmatpush1.xpose.msra.mxu0 0.0
    %224 = vmatprep.subr.mxu0 0.0
    %225 = vmatpush1.xpose.msra.mxu0 0.0
    %226 = vmatprep.subr.mxu0 0.0
    %227 = vmatpush1.xpose.msra.mxu0 0.0
    %228 = vmatprep.subr.mxu0 0.0
    %229 = vmatpush1.xpose.msra.mxu0 0.0
    %230 = vmatprep.subr.mxu0 0.0
    %231 = vmatpush1.xpose.msra.mxu0 0.0
    %232 = vmatprep.subr.mxu0 0.0
    %233 = vmatpush1.xpose.msra.mxu0 0.0
    %234 = vmatprep.mubr.f32.mxu0 0.0
    %235 = vmatmul.mubr.f32.gmra.mrb[0].mxu0 %v21
    %v236 = vpop.f32.mrb[0].mxu0
    %v237 = vadd.f32 0.0, %v236
    %v238 = vpop.f32.mrb[0].mxu0
    %239 = vdwg.mxu0
    %240 = vmatprep.subr.mxu0 0.0
    %241 = vmatpush1.xpose.msra.mxu0 %v21
    %242 = vmatprep.subr.mxu0 0.0
    %243 = vmatpush1.xpose.msra.mxu0 0.0
    %244 = vmatprep.subr.mxu0 0.0
    %245 = vmatpush1.xpose.msra.mxu0 0.0
    %246 = vmatprep.subr.mxu0 0.0
    %247 = vmatpush1.xpose.msra.mxu0 0.0
    %248 = vmatprep.subr.mxu0 0.0
    %249 = vmatpush1.xpose.msra.mxu0 0.0
    %250 = vmatprep.subr.mxu0 0.0
    %251 = vmatpush1.xpose.msra.mxu0 0.0
    %252 = vmatprep.subr.mxu0 0.0
    %253 = vmatpush1.xpose.msra.mxu0 0.0
    %254 = vmatprep.subr.mxu0 0.0
    %255 = vmatpush1.xpose.msra.mxu0 0.0
    %256 = vmatprep.subr.mxu0 0.0
    %257 = vmatpush1.xpose.msra.mxu0 0.0
    %258 = vmatprep.subr.mxu0 0.0
    %259 = vmatpush1.xpose.msra.mxu0 0.0
    %260 = vmatprep.subr.mxu0 0.0
    %261 = vmatpush1.xpose.msra.mxu0 0.0
    %262 = vmatprep.subr.mxu0 0.0
    %263 = vmatpush1.xpose.msra.mxu0 0.0
    %264 = vmatprep.subr.mxu0 0.0
    %265 = vmatpush1.xpose.msra.mxu0 0.0
    %266 = vmatprep.subr.mxu0 0.0
    %267 = vmatpush1.xpose.msra.mxu0 0.0
    %268 = vmatprep.subr.mxu0 0.0
    %269 = vmatpush1.xpose.msra.mxu0 0.0
    %270 = vmatprep.subr.mxu0 0.0
    %271 = vmatpush1.xpose.msra.mxu0 0.0
    %272 = vmatprep.subr.mxu0 0.0
    %273 = vmatpush1.xpose.msra.mxu0 0.0
    %274 = vmatprep.subr.mxu0 0.0
    %275 = vmatpush1.xpose.msra.mxu0 0.0
    %276 = vmatprep.subr.mxu0 0.0
    %277 = vmatpush1.xpose.msra.mxu0 0.0
    %278 = vmatprep.subr.mxu0 0.0
    %279 = vmatpush1.xpose.msra.mxu0 0.0
    %280 = vmatprep.subr.mxu0 0.0
    %281 = vmatpush1.xpose.msra.mxu0 0.0
    %282 = vmatprep.subr.mxu0 0.0
    %283 = vmatpush1.xpose.msra.mxu0 0.0
    %284 = vmatprep.subr.mxu0 0.0
    %285 = vmatpush1.xpose.msra.mxu0 0.0
    %286 = vmatprep.subr.mxu0 0.0
    %287 = vmatpush1.xpose.msra.mxu0 0.0
    %288 = vmatprep.subr.mxu0 0.0
    %289 = vmatpush1.xpose.msra.mxu0 0.0
    %290 = vmatprep.subr.mxu0 0.0
    %291 = vmatpush1.xpose.msra.mxu0 0.0
    %292 = vmatprep.subr.mxu0 0.0
    %293 = vmatpush1.xpose.msra.mxu0 0.0
    %294 = vmatprep.subr.mxu0 0.0
    %295 = vmatpush1.xpose.msra.mxu0 0.0
    %296 = vmatprep.subr.mxu0 0.0
    %297 = vmatpush1.xpose.msra.mxu0 0.0
    %298 = vmatprep.subr.mxu0 0.0
    %299 = vmatpush1.xpose.msra.mxu0 0.0
    %300 = vmatprep.subr.mxu0 0.0
    %301 = vmatpush1.xpose.msra.mxu0 0.0
    %302 = vmatprep.subr.mxu0 0.0
    %303 = vmatpush1.xpose.msra.mxu0 0.0
    %304 = vmatprep.mubr.f32.mxu0 0.0
    %305 = vmatmul.mubr.f32.gmra.mrb[0].mxu0 %v22
    %v306 = vpop.f32.mrb[0].mxu0
    %v307 = vadd.f32 0.0, %v306
    %v308 = vpop.f32.mrb[0].mxu0
    %309 = vdwg.mxu0
    %v310 = vmul.f32 %v97, %v29
    %vm311 = vcmask 64512
    %v312 = vsel %vm311, %v310, 0.0
    %313 = vadd.xlane.f32.xlu0 %v312
    %v314 = vpop.xlane.xlu0 %313
    %v315 = vrot.slane %v312, 4
    %v316 = vadd.f32 %v312, %v315
    %v317 = vrot.slane %v316, 2
    %v318 = vadd.f32 %v316, %v317
    %v319 = vrot.slane %v318, 1
    %v320 = vadd.f32 %v318, %v319
    %v321 = vmul.f32 %v167, %v29
    %v322 = vsel %vm311, %v321, 0.0
    %323 = vadd.xlane.f32.xlu0 %v322
    %v324 = vpop.xlane.xlu0 %323
    %v325 = vrot.slane %v322, 4
    %v326 = vadd.f32 %v322, %v325
    %v327 = vrot.slane %v326, 2
    %v328 = vadd.f32 %v326, %v327
    %v329 = vrot.slane %v328, 1
    %v330 = vadd.f32 %v328, %v329
    %v331 = vadd.f32 %v314, %v330
    %v332 = vmul.f32 %v237, 2.0
    %v333 = vsub.f32 %v331, %v332
    %v334 = vmax.f32 %v333, 0.0
    %v335 = vadd.f32 %v334, 1e-12
    %v336 = vrsqrt.pop %v335
    %v337 = vmul.f32 %v335, %v336
    %vm338 = vcmp.eq.f32.partialorder %v335, inf
    %v339 = vsel %vm338, %v335, %v337
    %vm340 = vcmp.eq.f32.partialorder %v335, 0.0
    %v341 = vand.u32 %v335, 2147483648
    %v342 = vsel %vm340, %v341, %v339
    %v343 = vadd.f32 %v324, %v320
    %v344 = vmul.f32 %v307, 2.0
    %v345 = vsub.f32 %v343, %v344
    %v346 = vmax.f32 %v345, 0.0
    %v347 = vadd.f32 %v346, 1e-12
    %v348 = vrsqrt.pop %v347
    %v349 = vmul.f32 %v347, %v348
    %vm350 = vcmp.eq.f32.partialorder %v347, inf
    %v351 = vsel %vm350, %v347, %v349
    %vm352 = vcmp.eq.f32.partialorder %v347, 0.0
    %v353 = vand.u32 %v347, 2147483648
    %v354 = vsel %vm352, %v353, %v351
    %v355 = vadd.f32 %v324, %v330
    %v356 = vmul.f32 %v167, 2.0
    %v357 = vsub.f32 %v355, %v356
    %v358 = vmax.f32 %v357, 0.0
    %v359 = vadd.f32 %v358, 1e-12
    %v360 = vrsqrt.pop %v359
    %v361 = vmul.f32 %v359, %v360
    %vm362 = vcmp.eq.f32.partialorder %v359, inf
    %v363 = vsel %vm362, %v359, %v361
    %vm364 = vcmp.eq.f32.partialorder %v359, 0.0
    %v365 = vand.u32 %v359, 2147483648
    %v366 = vsel %vm364, %v365, %v363
    %v367 = vadd.f32 %v314, %v320
    %v368 = vmul.f32 %v97, 2.0
    %v369 = vsub.f32 %v367, %v368
    %v370 = vmax.f32 %v369, 0.0
    %v371 = vadd.f32 %v370, 1e-12
    %v372 = vrsqrt.pop %v371
    %v373 = vmul.f32 %v371, %v372
    %vm374 = vcmp.eq.f32.partialorder %v371, inf
    %v375 = vsel %vm374, %v371, %v373
    %vm376 = vcmp.eq.f32.partialorder %v371, 0.0
    %v377 = vand.u32 %v371, 2147483648
    %v378 = vsel %vm376, %v377, %v375
    %v379 = vld [vmem:[%s1] sm:$0xff]
    %v380 = vld [vmem:[%s4] sm:$0x1]
    %381 = vset.pattern.permute.xlu0 0
    %382 = vperm.xlu0 %381, %v379
    %v383 = vpop.permute.xlu0 %382
    %v384 = vlaneseq
    %v385 = vshrl.u32 %v384, 7
    %v386 = vsub.s32 0, %v385
    %v387 = vrot.slane %v380, %v386
    %vm388 = vcmp.eq.s32.totalorder %v383, %v387
    %v389 = vsel %vm388, 1, 0
    %v390 = vcvt.s32.f32 %v389
    %v391 = vld [vmem:[%s3] sm:$0xff]
    %v392 = vld [vmem:[%s2] sm:$0x1]
    %393 = vset.pattern.permute.xlu0 0
    %394 = vperm.xlu0 %393, %v391
    %v395 = vpop.permute.xlu0 %394
    %v396 = vlaneseq
    %v397 = vshrl.u32 %v396, 7
    %v398 = vsub.s32 0, %v397
    %v399 = vrot.slane %v392, %v398
    %vm400 = vcmp.eq.s32.totalorder %v395, %v399
    %v401 = vsel %vm400, 1, 0
    %v402 = vcvt.s32.f32 %v401
    %v403 = vmul.f32 %v342, %v390
    %v404 = vsel %vm311, %v403, -inf
    %405 = vmax.xlane.f32.xlu0 %v404
    %v406 = vpop.xlane.xlu0 %405
    %vm407 = vcmp.eq.f32.partialorder %v403, %v406
    %v408 = vsel %vm407, %v24, 8
    %v409 = vsel %vm311, %v408, 2147483647
    %v410 = vand.u32 %v409, 65535
    %v411 = vshra.s32 %v409, 16
    %v412 = vcvt.s32.f32 %v410
    %v413 = vcvt.s32.f32 %v411
    %414 = vmin.xlane.f32.xlu0 %v413
    %v415 = vpop.xlane.xlu0 %414
    %vm416 = vcmp.eq.f32.partialorder %v413, %v415
    %v417 = vsel %vm416, %v412, inf
    %418 = vmin.xlane.f32.xlu0 %v417
    %v419 = vpop.xlane.xlu0 %418
    %v420 = vcvt.f32.s32 %v419
    %v421 = vcvt.f32.s32 %v415
    %v422 = vshll.u32 %v421, 16
    %v423 = vadd.s32 %v422, %v420
    %v424 = vmul.f32 %v390, 100000.0
    %v425 = vadd.f32 %v342, %v424
    %v426 = vsel %vm311, %v425, inf
    %427 = vmin.xlane.f32.xlu0 %v426
    %v428 = vpop.xlane.xlu0 %427
    %vm429 = vcmp.eq.f32.partialorder %v425, %v428
    %v430 = vsel %vm429, %v24, 8
    %v431 = vsel %vm311, %v430, 2147483647
    %v432 = vand.u32 %v431, 65535
    %v433 = vshra.s32 %v431, 16
    %v434 = vcvt.s32.f32 %v432
    %v435 = vcvt.s32.f32 %v433
    %436 = vmin.xlane.f32.xlu0 %v435
    %v437 = vpop.xlane.xlu0 %436
    %vm438 = vcmp.eq.f32.partialorder %v435, %v437
    %v439 = vsel %vm438, %v434, inf
    %440 = vmin.xlane.f32.xlu0 %v439
    %v441 = vpop.xlane.xlu0 %440
    %v442 = vcvt.f32.s32 %v441
    %v443 = vcvt.f32.s32 %v437
    %v444 = vshll.u32 %v443, 16
    %v445 = vadd.s32 %v444, %v442
    %v446 = vsub.f32 %v406, %v428
    %v447 = vadd.f32 %v446, 0.5
    %v448 = vmax.f32 %v447, 0.0
    %v449 = vrot.slane %v448, 4
    %v450 = vadd.f32 %v448, %v449
    %v451 = vrot.slane %v450, 2
    %v452 = vadd.f32 %v450, %v451
    %v453 = vrot.slane %v452, 1
    %v454 = vadd.f32 %v452, %v453
    %v455 = vrcp.pop 8.0
    %v456 = vmul.f32 %v454, %v455
    %vm457 = vcmp.eq.s32.totalorder %v24, %v423
    %v458 = vsel %vm457, 1, 0
    %v459 = vcvt.s32.f32 %v458
    %v461 = vsel %vm311, %v459, 0
    %463 = vmatprep.subr.mxu0 0.0
    %464 = vmatpush1.msra.mxu0 %v366
    %465 = vmatprep.subr.mxu0 0.0
    %466 = vmatpush1.msra.mxu0 0.0
    %467 = vmatprep.subr.mxu0 0.0
    %468 = vmatpush1.msra.mxu0 0.0
    %469 = vmatprep.subr.mxu0 0.0
    %470 = vmatpush1.msra.mxu0 0.0
    %471 = vmatprep.subr.mxu0 0.0
    %472 = vmatpush1.msra.mxu0 0.0
    %473 = vmatprep.subr.mxu0 0.0
    %474 = vmatpush1.msra.mxu0 0.0
    %475 = vmatprep.subr.mxu0 0.0
    %476 = vmatpush1.msra.mxu0 0.0
    %477 = vmatprep.subr.mxu0 0.0
    %478 = vmatpush1.msra.mxu0 0.0
    %479 = vmatprep.subr.mxu0 0.0
    %480 = vmatpush1.msra.mxu0 0.0
    %481 = vmatprep.subr.mxu0 0.0
    %482 = vmatpush1.msra.mxu0 0.0
    %483 = vmatprep.subr.mxu0 0.0
    %484 = vmatpush1.msra.mxu0 0.0
    %485 = vmatprep.subr.mxu0 0.0
    %486 = vmatpush1.msra.mxu0 0.0
    %487 = vmatprep.subr.mxu0 0.0
    %488 = vmatpush1.msra.mxu0 0.0
    %489 = vmatprep.subr.mxu0 0.0
    %490 = vmatpush1.msra.mxu0 0.0
    %491 = vmatprep.subr.mxu0 0.0
    %492 = vmatpush1.msra.mxu0 0.0
    %493 = vmatprep.subr.mxu0 0.0
    %494 = vmatpush1.msra.mxu0 0.0
    %495 = vmatprep.subr.mxu0 0.0
    %496 = vmatpush1.msra.mxu0 0.0
    %497 = vmatprep.subr.mxu0 0.0
    %498 = vmatpush1.msra.mxu0 0.0
    %499 = vmatprep.subr.mxu0 0.0
    %500 = vmatpush1.msra.mxu0 0.0
    %501 = vmatprep.subr.mxu0 0.0
    %502 = vmatpush1.msra.mxu0 0.0
    %503 = vmatprep.subr.mxu0 0.0
    %504 = vmatpush1.msra.mxu0 0.0
    %505 = vmatprep.subr.mxu0 0.0
    %506 = vmatpush1.msra.mxu0 0.0
    %507 = vmatprep.subr.mxu0 0.0
    %508 = vmatpush1.msra.mxu0 0.0
    %509 = vmatprep.subr.mxu0 0.0
    %510 = vmatpush1.msra.mxu0 0.0
    %511 = vmatprep.subr.mxu0 0.0
    %512 = vmatpush1.msra.mxu0 0.0
    %513 = vmatprep.subr.mxu0 0.0
    %514 = vmatpush1.msra.mxu0 0.0
    %515 = vmatprep.subr.mxu0 0.0
    %516 = vmatpush1.msra.mxu0 0.0
    %517 = vmatprep.subr.mxu0 0.0
    %518 = vmatpush1.msra.mxu0 0.0
    %519 = vmatprep.subr.mxu0 0.0
    %520 = vmatpush1.msra.mxu0 0.0
    %521 = vmatprep.subr.mxu0 0.0
    %522 = vmatpush1.msra.mxu0 0.0
    %523 = vmatprep.subr.mxu0 0.0
    %524 = vmatpush1.msra.mxu0 0.0
    %525 = vmatprep.subr.mxu0 0.0
    %526 = vmatpush1.msra.mxu0 0.0
    %527 = vmatprep.mubr.f32.mxu0 0.0
    %528 = vmatmul.mubr.f32.gmra.mrb[0].mxu0 %v461
    %v529 = vpop.f32.mrb[0].mxu0
    %v530 = vadd.f32 0.0, %v529
    %v531 = vpop.f32.mrb[0].mxu0
    %532 = vdwg.mxu0
    %vm533 = vcmp.eq.s32.totalorder %v24, %v445
    %v534 = vsel %vm533, 1, 0
    %v535 = vcvt.s32.f32 %v534
    %v536 = vmul.f32 %v530, %v535
    %v537 = vsel %vm311, %v536, 0.0
    %538 = vadd.xlane.f32.xlu0 %v537
    %v539 = vpop.xlane.xlu0 %538
    %v540 = vsub.f32 0.1, %v539
    %v541 = vmax.f32 %v540, 0.0
    %v542 = vrot.slane %v541, 4
    %v543 = vadd.f32 %v541, %v542
    %v544 = vrot.slane %v543, 2
    %v545 = vadd.f32 %v543, %v544
    %v546 = vrot.slane %v545, 1
    %v547 = vadd.f32 %v545, %v546
    %v548 = vmul.f32 %v547, %v455
    %v549 = vmul.f32 %v354, %v402
    %v550 = vsel %vm311, %v549, -inf
    %551 = vmax.xlane.f32.xlu0 %v550
    %v552 = vpop.xlane.xlu0 %551
    %vm553 = vcmp.eq.f32.partialorder %v549, %v552
    %v554 = vsel %vm553, %v24, 8
    %v555 = vsel %vm311, %v554, 2147483647
    %v556 = vand.u32 %v555, 65535
    %v557 = vshra.s32 %v555, 16
    %v558 = vcvt.s32.f32 %v556
    %v559 = vcvt.s32.f32 %v557
    %560 = vmin.xlane.f32.xlu0 %v559
    %v561 = vpop.xlane.xlu0 %560
    %vm562 = vcmp.eq.f32.partialorder %v559, %v561
    %v563 = vsel %vm562, %v558, inf
    %564 = vmin.xlane.f32.xlu0 %v563
    %v565 = vpop.xlane.xlu0 %564
    %v566 = vcvt.f32.s32 %v565
    %v567 = vcvt.f32.s32 %v561
    %v568 = vshll.u32 %v567, 16
    %v569 = vadd.s32 %v568, %v566
    %v570 = vmul.f32 %v402, 100000.0
    %v571 = vadd.f32 %v354, %v570
    %v572 = vsel %vm311, %v571, inf
    %573 = vmin.xlane.f32.xlu0 %v572
    %v574 = vpop.xlane.xlu0 %573
    %vm575 = vcmp.eq.f32.partialorder %v571, %v574
    %v576 = vsel %vm575, %v24, 8
    %v577 = vsel %vm311, %v576, 2147483647
    %v578 = vand.u32 %v577, 65535
    %v579 = vshra.s32 %v577, 16
    %v580 = vcvt.s32.f32 %v578
    %v581 = vcvt.s32.f32 %v579
    %582 = vmin.xlane.f32.xlu0 %v581
    %v583 = vpop.xlane.xlu0 %582
    %vm584 = vcmp.eq.f32.partialorder %v581, %v583
    %v585 = vsel %vm584, %v580, inf
    %586 = vmin.xlane.f32.xlu0 %v585
    %v587 = vpop.xlane.xlu0 %586
    %v588 = vcvt.f32.s32 %v587
    %v589 = vcvt.f32.s32 %v583
    %v590 = vshll.u32 %v589, 16
    %v591 = vadd.s32 %v590, %v588
    %v592 = vsub.f32 %v552, %v574
    %v593 = vadd.f32 %v592, 0.5
    %v594 = vmax.f32 %v593, 0.0
    %v595 = vrot.slane %v594, 4
    %v596 = vadd.f32 %v594, %v595
    %v597 = vrot.slane %v596, 2
    %v598 = vadd.f32 %v596, %v597
    %v599 = vrot.slane %v598, 1
    %v600 = vadd.f32 %v598, %v599
    %v601 = vmul.f32 %v600, %v455
    %vm602 = vcmp.eq.s32.totalorder %v24, %v569
    %v603 = vsel %vm602, 1, 0
    %v604 = vcvt.s32.f32 %v603
    %v606 = vsel %vm311, %v604, 0
    %608 = vmatprep.subr.mxu0 0.0
    %609 = vmatpush1.msra.mxu0 %v378
    %610 = vmatprep.subr.mxu0 0.0
    %611 = vmatpush1.msra.mxu0 0.0
    %612 = vmatprep.subr.mxu0 0.0
    %613 = vmatpush1.msra.mxu0 0.0
    %614 = vmatprep.subr.mxu0 0.0
    %615 = vmatpush1.msra.mxu0 0.0
    %616 = vmatprep.subr.mxu0 0.0
    %617 = vmatpush1.msra.mxu0 0.0
    %618 = vmatprep.subr.mxu0 0.0
    %619 = vmatpush1.msra.mxu0 0.0
    %620 = vmatprep.subr.mxu0 0.0
    %621 = vmatpush1.msra.mxu0 0.0
    %622 = vmatprep.subr.mxu0 0.0
    %623 = vmatpush1.msra.mxu0 0.0
    %624 = vmatprep.subr.mxu0 0.0
    %625 = vmatpush1.msra.mxu0 0.0
    %626 = vmatprep.subr.mxu0 0.0
    %627 = vmatpush1.msra.mxu0 0.0
    %628 = vmatprep.subr.mxu0 0.0
    %629 = vmatpush1.msra.mxu0 0.0
    %630 = vmatprep.subr.mxu0 0.0
    %631 = vmatpush1.msra.mxu0 0.0
    %632 = vmatprep.subr.mxu0 0.0
    %633 = vmatpush1.msra.mxu0 0.0
    %634 = vmatprep.subr.mxu0 0.0
    %635 = vmatpush1.msra.mxu0 0.0
    %636 = vmatprep.subr.mxu0 0.0
    %637 = vmatpush1.msra.mxu0 0.0
    %638 = vmatprep.subr.mxu0 0.0
    %639 = vmatpush1.msra.mxu0 0.0
    %640 = vmatprep.subr.mxu0 0.0
    %641 = vmatpush1.msra.mxu0 0.0
    %642 = vmatprep.subr.mxu0 0.0
    %643 = vmatpush1.msra.mxu0 0.0
    %644 = vmatprep.subr.mxu0 0.0
    %645 = vmatpush1.msra.mxu0 0.0
    %646 = vmatprep.subr.mxu0 0.0
    %647 = vmatpush1.msra.mxu0 0.0
    %648 = vmatprep.subr.mxu0 0.0
    %649 = vmatpush1.msra.mxu0 0.0
    %650 = vmatprep.subr.mxu0 0.0
    %651 = vmatpush1.msra.mxu0 0.0
    %652 = vmatprep.subr.mxu0 0.0
    %653 = vmatpush1.msra.mxu0 0.0
    %654 = vmatprep.subr.mxu0 0.0
    %655 = vmatpush1.msra.mxu0 0.0
    %656 = vmatprep.subr.mxu0 0.0
    %657 = vmatpush1.msra.mxu0 0.0
    %658 = vmatprep.subr.mxu0 0.0
    %659 = vmatpush1.msra.mxu0 0.0
    %660 = vmatprep.subr.mxu0 0.0
    %661 = vmatpush1.msra.mxu0 0.0
    %662 = vmatprep.subr.mxu0 0.0
    %663 = vmatpush1.msra.mxu0 0.0
    %664 = vmatprep.subr.mxu0 0.0
    %665 = vmatpush1.msra.mxu0 0.0
    %666 = vmatprep.subr.mxu0 0.0
    %667 = vmatpush1.msra.mxu0 0.0
    %668 = vmatprep.subr.mxu0 0.0
    %669 = vmatpush1.msra.mxu0 0.0
    %670 = vmatprep.subr.mxu0 0.0
    %671 = vmatpush1.msra.mxu0 0.0
    %672 = vmatprep.mubr.f32.mxu0 0.0
    %673 = vmatmul.mubr.f32.gmra.mrb[0].mxu0 %v606
    %v674 = vpop.f32.mrb[0].mxu0
    %v675 = vadd.f32 0.0, %v674
    %v676 = vpop.f32.mrb[0].mxu0
    %677 = vdwg.mxu0
    %vm678 = vcmp.eq.s32.totalorder %v24, %v591
    %v679 = vsel %vm678, 1, 0
    %v680 = vcvt.s32.f32 %v679
    %v681 = vmul.f32 %v675, %v680
    %v682 = vsel %vm311, %v681, 0.0
    %683 = vadd.xlane.f32.xlu0 %v682
    %v684 = vpop.xlane.xlu0 %683
    %v685 = vsub.f32 0.1, %v684
    %v686 = vmax.f32 %v685, 0.0
    %v687 = vrot.slane %v686, 4
    %v688 = vadd.f32 %v686, %v687
    %v689 = vrot.slane %v688, 2
    %v690 = vadd.f32 %v688, %v689
    %v691 = vrot.slane %v690, 1
    %v692 = vadd.f32 %v690, %v691
    %v693 = vmul.f32 %v692, %v455
    %v694 = vadd.f32 %v456, %v601
    %v695 = vadd.f32 %v548, %v693
    %v696 = vmul.f32 %v695, 0.5
    %v697 = vadd.f32 %v694, %v696
    %vm698 = vcmask 0
    %699 = vst.msk [vmem:[#allocation2] sm:$0x1] %vm698, %v697
    // Predicated region
    $region22: #{tpu_custom_call.1} parent=1 // pred_check
      _
    $region23: #{tpu_custom_call.1} parent=1 // pred_check_branch
      %701 = sbr.rel (0) target = $region25
    $region24: #{tpu_custom_call.1} parent=1 // pred_region
      %s703 = ssub.s32 16, 16
      %704 = vsyncadd [#allocation3], %s703
      %s706 = sshll.u32 [#allocation2], 4
      %s707 = int_to_ptr.vmem [resolvable:$true] %s706
      %709 = dma.vmem_to_hbm [thread:$0]  %s707, 16, %s5, [#allocation3]
    $region25: #{tpu_custom_call.1} parent=1 // pred_fallthru
      _
    // Predicated region
    $region26: #{tpu_custom_call.1} parent=1 // pred_check
      _
    $region27: #{tpu_custom_call.1} parent=1 // pred_check_branch
      %711 = sbr.rel (0) target = $region29
    $region28: #{tpu_custom_call.1} parent=1 // pred_region
      %712 = dma.done [#allocation3], 16
    $region29: #{tpu_custom_call.1} parent=1 // pred_fallthru
      _
    %713 = vsyncpa [#allocation3], 1

</llo_original>
